<compile_context>
chip_gen: v5e
topology: v5e:2x2
jax: 0.10.0
libtpu: 0.0.40
codegen_flags: <defaults>
</compile_context>

<pallas_src>
import jax
import jax.numpy as jnp
from jax.experimental import pallas as pl
from jax.experimental.pallas import tpu as pltpu


def siamese_kernel(s1_ref, s2_ref, w1_ref, b1_ref, w2_ref, b2_ref, o_ref):
    # s1_ref, s2_ref : (TB, S, D) VMEM blocks (one batch tile per grid step)
    # w1_ref         : (D, H)   pre-transposed fc1 weight
    # b1_ref         : (1, H)   fc1 bias (2D, no in-kernel broadcast plumbing)
    # w2_ref         : (1, H)   fc2 weight row (PyTorch (1,H) layout as-is)
    # b2_ref         : (1, 1)   fc2 bias
    # o_ref          : (TB, 128) lane-dense output slab
    seq_len = s1_ref.shape[1]
    inv_s = 1.0 / float(seq_len)

    # Fused mean: one reduction over the diff instead of two over s1 and s2.
    # (f32 cast guards a bf16 input path; no-op for f32 inputs.)
    diff = s1_ref[...].astype(jnp.float32) - s2_ref[...].astype(jnp.float32)
    distance = jnp.abs(jnp.sum(diff, axis=1) * inv_s)              # (TB, D)

    # fc1 + relu: MXU matmul, f32 accumulate. M = TB (batch tile), K = D, N = H.
    h = jnp.dot(distance, w1_ref[...],
                preferred_element_type=jnp.float32) + b1_ref[...]  # (TB, H)
    h = jnp.maximum(h, 0.0)

    # fc2 + sigmoid: output width is 1 -> keep it on the VPU (multiply +
    # lane reduce) instead of a 1-wide MXU matmul.
    z = jnp.sum(h * w2_ref[...], axis=-1, keepdims=True) + b2_ref[...]  # (TB,1)
    sig = jax.nn.sigmoid(z)

    # Lane-dense store: broadcast across the 128 lanes -> unmasked full-vreg
    # vst. Wrapper slices [:, :1]. (Writeback bytes are negligible vs the
    # (B,S,D) input stream.)
    o_ref[...] = jnp.broadcast_to(sig, o_ref.shape)


def prepare_params(w1, b1, w2, b2):
    """One-time parameter prep (hoisted out of the per-call path).

    PyTorch layouts: w1 (H, D), b1 (H,), w2 (1, H), b2 (1,).
    Returns: w1_t (D, H), b1 (1, H), w2_row (1, H), b2 (1, 1).
    """
    w1_t = jnp.transpose(w1)          # (D, H) so the MXU consumes it row-major
    b1_2d = b1.reshape(1, -1)         # (1, H)
    w2_row = w2.reshape(1, -1)        # (1, H) -- already the row fc2-VPU needs
    b2_2d = b2.reshape(1, 1)          # (1, 1)
    return w1_t, b1_2d, w2_row, b2_2d


def siamese_forward(seq1, seq2, w1_t, b1_2d, w2_row, b2_2d, *, block_b=8):
    """seq1, seq2: (B, S, D). Params as produced by prepare_params()."""
    B, S, D = seq1.shape
    H = w1_t.shape[1]

    # Batch tile: multiple of 8 sublanes. For toy sizes 8 is enough; at scale
    # raise toward 128-512 (re-derive per generation: v7x has 64 MiB VMEM).
    num_blocks = pl.cdiv(B, block_b)
    b_pad = num_blocks * block_b
    if b_pad != B:
        pad = b_pad - B
        seq1 = jnp.pad(seq1, ((0, pad), (0, 0), (0, 0)))
        seq2 = jnp.pad(seq2, ((0, pad), (0, 0), (0, 0)))

    out = pl.pallas_call(
        siamese_kernel,
        out_shape=jax.ShapeDtypeStruct((b_pad, 128), jnp.float32),
        grid=(num_blocks,),
        in_specs=[
            pl.BlockSpec((block_b, S, D), lambda i: (i, 0, 0)),  # seq1 tile
            pl.BlockSpec((block_b, S, D), lambda i: (i, 0, 0)),  # seq2 tile
            pl.BlockSpec((D, H), lambda i: (0, 0)),              # w1_t (resident)
            pl.BlockSpec((1, H), lambda i: (0, 0)),              # b1
            pl.BlockSpec((1, H), lambda i: (0, 0)),              # w2 row
            pl.BlockSpec((1, 1), lambda i: (0, 0)),              # b2
        ],
        out_specs=pl.BlockSpec((block_b, 128), lambda i: (i, 0)),
        compiler_params=pltpu.CompilerParams(
            # batch tiles are independent -> shard across TCs on v7x
            dimension_semantics=("parallel",),
            # explicit scoped-VMEM budget with headroom under v7x's 64 MiB
            vmem_limit_bytes=32 * 1024 * 1024,
        ),
    )(seq1, seq2, w1_t, b1_2d, w2_row, b2_2d)

    # Slice the lane-dense slab back to the PyTorch output shape (B, 1).
    return out[:B, :1]
    # NOTE: if S grows large, add a second "arbitrary" grid axis over S and
    # accumulate the sequence sum in VMEM scratch (pl.when init/finalize) so
    # the (TB, S, D) block no longer has to fit VMEM in one piece.


if __name__ == "__main__":
    B, S, D, H = 2, 8, 32, 32

    key = jax.random.PRNGKey(0)
    k1, k2, kw1, kb1, kw2, kb2 = jax.random.split(key, 6)

    seq1 = jax.random.normal(k1, (B, S, D), dtype=jnp.float32)
    seq2 = jax.random.normal(k2, (B, S, D), dtype=jnp.float32)

    # PyTorch Linear shapes: (out, in) weights, (out,) biases.
    w1 = jax.random.normal(kw1, (H, D), dtype=jnp.float32) * 0.1
    b1 = jax.random.normal(kb1, (H,), dtype=jnp.float32) * 0.1
    w2 = jax.random.normal(kw2, (1, H), dtype=jnp.float32) * 0.1
    b2 = jax.random.normal(kb2, (1,), dtype=jnp.float32) * 0.1

    params = prepare_params(w1, b1, w2, b2)   # one-time layout prep
    out = siamese_forward(seq1, seq2, *params)
    out = jax.block_until_ready(out)

    # Pure-JAX reference for correctness.
    def ref(s1, s2):
        m1 = s1.mean(axis=1)
        m2 = s2.mean(axis=1)
        d = jnp.abs(m1 - m2)
        x = jnp.maximum(d @ w1.T + b1, 0.0)
        return jax.nn.sigmoid(x @ w2.T + b2)

    expected = ref(seq1, seq2)
    assert out.shape == (B, 1), out.shape
    assert jnp.allclose(out, expected, atol=1e-5, rtol=1e-5), (out, expected)

    print("KERNEL_OK")
</pallas_src>

<mosaic_0001>
module attributes {stable_mosaic.version = 11 : i64} {
  func.func @siamese_kernel(%arg0: i32, %arg1: memref<8x8x32xf32, #tpu.memory_space<vmem>>, %arg2: memref<8x8x32xf32, #tpu.memory_space<vmem>>, %arg3: memref<32x32xf32, #tpu.memory_space<vmem>>, %arg4: memref<1x32xf32, #tpu.memory_space<vmem>>, %arg5: memref<1x32xf32, #tpu.memory_space<vmem>>, %arg6: memref<1x1xf32, #tpu.memory_space<vmem>>, %arg7: memref<8x128xf32, #tpu.memory_space<vmem>>) attributes {dimension_semantics = [#tpu.dimension_semantics<parallel>], iteration_bounds = array<i64: 1>, scalar_prefetch = 0 : i64, scratch_operands = 0 : i64, tpu.core_type = #tpu.core_type<tc>, window_params = [{transform_indices = @transform_0, window_bounds = array<i64: 8, 8, 32>}, {transform_indices = @transform_1, window_bounds = array<i64: 8, 8, 32>}, {pipeline_mode = #tpu.pipeline_mode<synchronous>, transform_indices = @transform_2, window_bounds = array<i64: 32, 32>}, {pipeline_mode = #tpu.pipeline_mode<synchronous>, transform_indices = @transform_3, window_bounds = array<i64: 1, 32>}, {pipeline_mode = #tpu.pipeline_mode<synchronous>, transform_indices = @transform_4, window_bounds = array<i64: 1, 32>}, {pipeline_mode = #tpu.pipeline_mode<synchronous>, transform_indices = @transform_5, window_bounds = array<i64: 1, 1>}, {transform_indices = @transform_6, window_bounds = array<i64: 8, 128>}]} {
    %c0 = arith.constant 0 : index
    %c0_0 = arith.constant 0 : index
    %c0_1 = arith.constant 0 : index
    %0 = vector.load %arg1[%c0, %c0_0, %c0_1] : memref<8x8x32xf32, #tpu.memory_space<vmem>>, vector<8x8x32xf32>
    %c0_2 = arith.constant 0 : index
    %c0_3 = arith.constant 0 : index
    %c0_4 = arith.constant 0 : index
    %1 = vector.load %arg2[%c0_2, %c0_3, %c0_4] : memref<8x8x32xf32, #tpu.memory_space<vmem>>, vector<8x8x32xf32>
    %2 = arith.subf %0, %1 : vector<8x8x32xf32>
    %cst = arith.constant dense<0.000000e+00> : vector<8x32xf32>
    %3 = vector.multi_reduction <add>, %2, %cst [1] : vector<8x8x32xf32> to vector<8x32xf32>
    %cst_5 = arith.constant 1.250000e-01 : f32
    %4 = vector.broadcast %cst_5 : f32 to vector<8x32xf32>
    %5 = arith.mulf %3, %4 : vector<8x32xf32>
    %6 = math.absf %5 : vector<8x32xf32>
    %c0_6 = arith.constant 0 : index
    %c0_7 = arith.constant 0 : index
    %7 = vector.load %arg3[%c0_6, %c0_7] : memref<32x32xf32, #tpu.memory_space<vmem>>, vector<32x32xf32>
    %cst_8 = arith.constant dense<0.000000e+00> : vector<8x32xf32>
    %8 = tpu.matmul %6, %7, %cst_8 {dimension_numbers = #tpu.dot_dimension_numbers<[1], [0], [0], [1], [0, 0, 1, 1], [], []>} : vector<8x32xf32>, vector<32x32xf32>, vector<8x32xf32> -> vector<8x32xf32>
    %c0_9 = arith.constant 0 : index
    %c0_10 = arith.constant 0 : index
    %9 = vector.load %arg4[%c0_9, %c0_10] : memref<1x32xf32, #tpu.memory_space<vmem>>, vector<1x32xf32>
    %10 = vector.broadcast %9 : vector<1x32xf32> to vector<8x32xf32>
    %11 = arith.addf %8, %10 : vector<8x32xf32>
    %cst_11 = arith.constant 0.000000e+00 : f32
    %12 = vector.broadcast %cst_11 : f32 to vector<8x32xf32>
    %13 = arith.maximumf %11, %12 : vector<8x32xf32>
    %c0_12 = arith.constant 0 : index
    %c0_13 = arith.constant 0 : index
    %14 = vector.load %arg5[%c0_12, %c0_13] : memref<1x32xf32, #tpu.memory_space<vmem>>, vector<1x32xf32>
    %15 = vector.broadcast %14 : vector<1x32xf32> to vector<8x32xf32>
    %16 = arith.mulf %13, %15 : vector<8x32xf32>
    %cst_14 = arith.constant dense<0.000000e+00> : vector<8xf32>
    %17 = vector.multi_reduction <add>, %16, %cst_14 [1] : vector<8x32xf32> to vector<8xf32>
    %18 = vector.shape_cast %17 : vector<8xf32> to vector<8x1xf32>
    %c0_15 = arith.constant 0 : index
    %c0_16 = arith.constant 0 : index
    %19 = vector.load %arg6[%c0_15, %c0_16] : memref<1x1xf32, #tpu.memory_space<vmem>>, vector<1x1xf32>
    %20 = vector.broadcast %19 : vector<1x1xf32> to vector<8x1xf32>
    %21 = arith.addf %18, %20 : vector<8x1xf32>
    %22 = arith.negf %21 : vector<8x1xf32>
    %23 = math.exp %22 : vector<8x1xf32>
    %cst_17 = arith.constant 1.000000e+00 : f32
    %24 = vector.broadcast %cst_17 : f32 to vector<8x1xf32>
    %25 = arith.addf %24, %23 : vector<8x1xf32>
    %26 = arith.divf %24, %25 : vector<8x1xf32>
    %27 = vector.shape_cast %26 : vector<8x1xf32> to vector<8x1xf32>
    %28 = vector.broadcast %27 : vector<8x1xf32> to vector<8x128xf32>
    %c0_18 = arith.constant 0 : index
    %c0_19 = arith.constant 0 : index
    %29 = vector.load %arg7[%c0_18, %c0_19] : memref<8x128xf32, #tpu.memory_space<vmem>>, vector<8x128xf32>
    tpu.vector_store %arg7[%c0_18, %c0_19], %28 {strides = array<i32>} : memref<8x128xf32, #tpu.memory_space<vmem>>, vector<8x128xf32>,
    return
  }
  func.func @transform_0(%arg0: i32) -> (i32, i32, i32) {
    %c0_i32 = arith.constant 0 : i32
    %c0_i32_0 = arith.constant 0 : i32
    %c0_i32_1 = arith.constant 0 : i32
    return %arg0, %c0_i32, %c0_i32_0 : i32, i32, i32
  }
  func.func @transform_1(%arg0: i32) -> (i32, i32, i32) {
    %c0_i32 = arith.constant 0 : i32
    %c0_i32_0 = arith.constant 0 : i32
    %c0_i32_1 = arith.constant 0 : i32
    return %arg0, %c0_i32, %c0_i32_0 : i32, i32, i32
  }
  func.func @transform_2(%arg0: i32) -> (i32, i32) {
    %c0_i32 = arith.constant 0 : i32
    %c0_i32_0 = arith.constant 0 : i32
    %c0_i32_1 = arith.constant 0 : i32
    return %c0_i32, %c0_i32_0 : i32, i32
  }
  func.func @transform_3(%arg0: i32) -> (i32, i32) {
    %c0_i32 = arith.constant 0 : i32
    %c0_i32_0 = arith.constant 0 : i32
    %c0_i32_1 = arith.constant 0 : i32
    return %c0_i32, %c0_i32_0 : i32, i32
  }
  func.func @transform_4(%arg0: i32) -> (i32, i32) {
    %c0_i32 = arith.constant 0 : i32
    %c0_i32_0 = arith.constant 0 : i32
    %c0_i32_1 = arith.constant 0 : i32
    return %c0_i32, %c0_i32_0 : i32, i32
  }
  func.func @transform_5(%arg0: i32) -> (i32, i32) {
    %c0_i32 = arith.constant 0 : i32
    %c0_i32_0 = arith.constant 0 : i32
    %c0_i32_1 = arith.constant 0 : i32
    return %c0_i32, %c0_i32_0 : i32, i32
  }
  func.func @transform_6(%arg0: i32) -> (i32, i32) {
    %c0_i32 = arith.constant 0 : i32
    %c0_i32_0 = arith.constant 0 : i32
    return %arg0, %c0_i32 : i32, i32
  }
}

</mosaic_0001>

<llo_original>
// kernel: tpu_custom_call.1
$region0: #{tpu_custom_call.1}
  #allocation0 [shape = 'u32[]', space=smem, size = 0x4, offset = 0x4, fixed_abs, tag = 'smem constant byte address 0x4 - core index']
  #allocation1 [shape = 'u32[72,128]{1,0:T(1,128)}', space=vmem, size = 0x9000, scoped, tag = 'internal scratch']
  #allocation2 [shape = 'f32[1,1]{1,0:T(1,128)S(1)}', space=vmem, size = 0x200, scoped, tag = 'scoped memory for tpu_custom_call.1']
  %s0 = inlined_call_operand.hbm [shape: f32[8,8,32], index: 0, kind: input, shape index: {}]
  %s1 = inlined_call_operand.hbm [shape: f32[8,8,32], index: 1, kind: input, shape index: {}]
  %s2 = inlined_call_operand.hbm [shape: f32[32,32], index: 2, kind: input, shape index: {}]
  %s3 = inlined_call_operand.vmem [shape: f32[1,32], index: 3, kind: input, shape index: {}]
  %s4 = inlined_call_operand.vmem [shape: f32[1,32], index: 4, kind: input, shape index: {}]
  %s5 = inlined_call_operand.<no memory space> [shape: f32[1,1], index: 5, kind: input, shape index: {}]
  %s6 = inlined_call_operand.hbm [shape: f32[8,128], index: 6, kind: output, shape index: {}]
  %s7 = sld [smem:[#allocation0]]
  $region46: #{tpu_custom_call.1} parent=0
    _
  %s9 = ssub.s32 1, %s7
  %s10 = scalar_select 0, %s9, %s7
  %v11 = vstv %s5
  %12 = vst [vmem:[#allocation2] sm:$0x1] %v11
  $region1: #{tpu_custom_call.1} parent=0
    #allocation3 [shape = 'u8[32768]{0}', space=vmem, size = 0x8000, scoped, tag = 'input window, operand 0, single buffered']
    #allocation4 [shape = 's32[1]{0}', space=sflag, size = 0x4, scoped, tag = 'scoped memory for tpu_custom_call.1']
    #allocation5 [shape = 's32[1]{0}', space=sflag, size = 0x4, scoped, tag = 'scoped memory for tpu_custom_call.1']
    #allocation6 [shape = 'u8[32768]{0}', space=vmem, size = 0x8000, scoped, tag = 'input window, operand 1, single buffered']
    #allocation7 [shape = 's32[1]{0}', space=sflag, size = 0x4, scoped, tag = 'scoped memory for tpu_custom_call.1']
    #allocation8 [shape = 'u8[16384]{0}', space=vmem, size = 0x4000, scoped, tag = 'input window, operand 2, single buffered']
    #allocation9 [shape = 'u8[4096]{0}', space=vmem, size = 0x1000, scoped, tag = 'output window, operand 0, single buffered']
    %13 = vsyncpa [#allocation4], 0
    %14 = vsyncpa [#allocation7], 0
    %15 = vsyncpa [#allocation5], 0
    // Predicated region
    $region2: #{tpu_custom_call.1} parent=1 // pred_check
      _
    $region3: #{tpu_custom_call.1} parent=1 // pred_check_branch
      %17 = sbr.rel (0) target = $region5
    $region4: #{tpu_custom_call.1} parent=1 // pred_region
      %19 = vsyncadd [#allocation4], 0
      %s20 = sshll.u32 %s0, 4
      %s21 = int_to_ptr.hbm [resolvable:$true] %s20
      %s22 = sshll.u32 [#allocation3], 4
      %s23 = int_to_ptr.vmem [resolvable:$true] %s22
      %28 = dma.hbm_to_vmem [thread:$0]  %s21, 1024, %s23, [#allocation4], 128, 128, 8
    $region5: #{tpu_custom_call.1} parent=1 // pred_fallthru
      _
    // Predicated region
    $region6: #{tpu_custom_call.1} parent=1 // pred_check
      _
    $region7: #{tpu_custom_call.1} parent=1 // pred_check_branch
      %30 = sbr.rel (0) target = $region9
    $region8: #{tpu_custom_call.1} parent=1 // pred_region
      %32 = vsyncadd [#allocation7], 0
      %s33 = sshll.u32 %s1, 4
      %s34 = int_to_ptr.hbm [resolvable:$true] %s33
      %s35 = sshll.u32 [#allocation6], 4
      %s36 = int_to_ptr.vmem [resolvable:$true] %s35
      %41 = dma.hbm_to_vmem [thread:$0]  %s34, 1024, %s36, [#allocation7], 128, 128, 8
    $region9: #{tpu_custom_call.1} parent=1 // pred_fallthru
      _
    // Predicated region
    $region10: #{tpu_custom_call.1} parent=1 // pred_check
      _
    $region11: #{tpu_custom_call.1} parent=1 // pred_check_branch
      %43 = sbr.rel (0) target = $region13
    $region12: #{tpu_custom_call.1} parent=1 // pred_region
      %45 = vsyncadd [#allocation7], 0
      %s46 = sshll.u32 %s2, 4
      %s47 = int_to_ptr.hbm [resolvable:$true] %s46
      %s48 = sshll.u32 [#allocation8], 4
      %s49 = int_to_ptr.vmem [resolvable:$true] %s48
      %54 = dma.hbm_to_vmem [thread:$0]  %s47, 512, %s49, [#allocation7], 128, 128, 8
    $region13: #{tpu_custom_call.1} parent=1 // pred_fallthru
      _
    // Predicated region
    $region14: #{tpu_custom_call.1} parent=1 // pred_check
      _
    $region15: #{tpu_custom_call.1} parent=1 // pred_check_branch
      %56 = sbr.rel (0) target = $region17
    $region16: #{tpu_custom_call.1} parent=1 // pred_region
      _
    $region17: #{tpu_custom_call.1} parent=1 // pred_fallthru
      _
    // Predicated region
    $region18: #{tpu_custom_call.1} parent=1 // pred_check
      _
    $region19: #{tpu_custom_call.1} parent=1 // pred_check_branch
      %58 = sbr.rel (0) target = $region21
    $region20: #{tpu_custom_call.1} parent=1 // pred_region
      _
    $region21: #{tpu_custom_call.1} parent=1 // pred_fallthru
      _
    // Predicated region
    $region22: #{tpu_custom_call.1} parent=1 // pred_check
      _
    $region23: #{tpu_custom_call.1} parent=1 // pred_check_branch
      %60 = sbr.rel (0) target = $region25
    $region24: #{tpu_custom_call.1} parent=1 // pred_region
      _
    $region25: #{tpu_custom_call.1} parent=1 // pred_fallthru
      _
    // Predicated region
    $region26: #{tpu_custom_call.1} parent=1 // pred_check
      _
    $region27: #{tpu_custom_call.1} parent=1 // pred_check_branch
      %62 = sbr.rel (0) target = $region29
    $region28: #{tpu_custom_call.1} parent=1 // pred_region
      %64 = dma.done [#allocation4], 1024
    $region29: #{tpu_custom_call.1} parent=1 // pred_fallthru
      _
    // Predicated region
    $region30: #{tpu_custom_call.1} parent=1 // pred_check
      _
    $region31: #{tpu_custom_call.1} parent=1 // pred_check_branch
      %66 = sbr.rel (0) target = $region33
    $region32: #{tpu_custom_call.1} parent=1 // pred_region
      %68 = dma.done [#allocation7], 1024
    $region33: #{tpu_custom_call.1} parent=1 // pred_fallthru
      _
    // Predicated region
    $region34: #{tpu_custom_call.1} parent=1 // pred_check
      _
    $region35: #{tpu_custom_call.1} parent=1 // pred_check_branch
      %70 = sbr.rel (0) target = $region37
    $region36: #{tpu_custom_call.1} parent=1 // pred_region
      %72 = dma.done [#allocation7], 512
    $region37: #{tpu_custom_call.1} parent=1 // pred_fallthru
      _
    %v73 = vld [vmem:[#allocation3] sm:$0xff]
    %v74 = vld [vmem:[#allocation3 + $0x8] sm:$0xff]
    %v75 = vld [vmem:[#allocation3 + $0x10] sm:$0xff]
    %v76 = vld [vmem:[#allocation3 + $0x18] sm:$0xff]
    %v77 = vld [vmem:[#allocation3 + $0x20] sm:$0xff]
    %v78 = vld [vmem:[#allocation3 + $0x28] sm:$0xff]
    %v79 = vld [vmem:[#allocation3 + $0x30] sm:$0xff]
    %v80 = vld [vmem:[#allocation3 + $0x38] sm:$0xff]
    %v81 = vld [vmem:[#allocation6] sm:$0xff]
    %v82 = vld [vmem:[#allocation6 + $0x8] sm:$0xff]
    %v83 = vld [vmem:[#allocation6 + $0x10] sm:$0xff]
    %v84 = vld [vmem:[#allocation6 + $0x18] sm:$0xff]
    %v85 = vld [vmem:[#allocation6 + $0x20] sm:$0xff]
    %v86 = vld [vmem:[#allocation6 + $0x28] sm:$0xff]
    %v87 = vld [vmem:[#allocation6 + $0x30] sm:$0xff]
    %v88 = vld [vmem:[#allocation6 + $0x38] sm:$0xff]
    %v89 = vsub.f32 %v73, %v81
    %v90 = vsub.f32 %v74, %v82
    %v91 = vsub.f32 %v75, %v83
    %v92 = vsub.f32 %v76, %v84
    %v93 = vsub.f32 %v77, %v85
    %v94 = vsub.f32 %v78, %v86
    %v95 = vsub.f32 %v79, %v87
    %v96 = vsub.f32 %v80, %v88
    %vm97 = vcmask 261120
    %v98 = vsel %vm97, %v89, 0.0
    %v99 = vrot.slane %v98, 4
    %v100 = vadd.f32 %v98, %v99
    %v101 = vrot.slane %v100, 2
    %v102 = vadd.f32 %v100, %v101
    %v103 = vrot.slane %v102, 1
    %v104 = vadd.f32 %v102, %v103
    %v105 = vsel %vm97, %v90, 0.0
    %v106 = vrot.slane %v105, 4
    %v107 = vadd.f32 %v105, %v106
    %v108 = vrot.slane %v107, 2
    %v109 = vadd.f32 %v107, %v108
    %v110 = vrot.slane %v109, 1
    %v111 = vadd.f32 %v109, %v110
    %v112 = vsel %vm97, %v91, 0.0
    %v113 = vrot.slane %v112, 4
    %v114 = vadd.f32 %v112, %v113
    %v115 = vrot.slane %v114, 2
    %v116 = vadd.f32 %v114, %v115
    %v117 = vrot.slane %v116, 1
    %v118 = vadd.f32 %v116, %v117
    %v119 = vsel %vm97, %v92, 0.0
    %v120 = vrot.slane %v119, 4
    %v121 = vadd.f32 %v119, %v120
    %v122 = vrot.slane %v121, 2
    %v123 = vadd.f32 %v121, %v122
    %v124 = vrot.slane %v123, 1
    %v125 = vadd.f32 %v123, %v124
    %v126 = vsel %vm97, %v93, 0.0
    %v127 = vrot.slane %v126, 4
    %v128 = vadd.f32 %v126, %v127
    %v129 = vrot.slane %v128, 2
    %v130 = vadd.f32 %v128, %v129
    %v131 = vrot.slane %v130, 1
    %v132 = vadd.f32 %v130, %v131
    %v133 = vsel %vm97, %v94, 0.0
    %v134 = vrot.slane %v133, 4
    %v135 = vadd.f32 %v133, %v134
    %v136 = vrot.slane %v135, 2
    %v137 = vadd.f32 %v135, %v136
    %v138 = vrot.slane %v137, 1
    %v139 = vadd.f32 %v137, %v138
    %v140 = vsel %vm97, %v95, 0.0
    %v141 = vrot.slane %v140, 4
    %v142 = vadd.f32 %v140, %v141
    %v143 = vrot.slane %v142, 2
    %v144 = vadd.f32 %v142, %v143
    %v145 = vrot.slane %v144, 1
    %v146 = vadd.f32 %v144, %v145
    %v147 = vsel %vm97, %v96, 0.0
    %v148 = vrot.slane %v147, 4
    %v149 = vadd.f32 %v147, %v148
    %v150 = vrot.slane %v149, 2
    %v151 = vadd.f32 %v149, %v150
    %v152 = vrot.slane %v151, 1
    %v153 = vadd.f32 %v151, %v152
    %v154 = vmul.f32 %v104, 0.125
    %v155 = vmul.f32 %v111, 0.125
    %v156 = vmul.f32 %v118, 0.125
    %v157 = vmul.f32 %v125, 0.125
    %v158 = vmul.f32 %v132, 0.125
    %v159 = vmul.f32 %v139, 0.125
    %v160 = vmul.f32 %v146, 0.125
    %v161 = vmul.f32 %v153, 0.125
    %v162 = vand.u32 2147483647, %v154
    %v163 = vand.u32 2147483647, %v155
    %v164 = vand.u32 2147483647, %v156
    %v165 = vand.u32 2147483647, %v157
    %v166 = vand.u32 2147483647, %v158
    %v167 = vand.u32 2147483647, %v159
    %v168 = vand.u32 2147483647, %v160
    %v169 = vand.u32 2147483647, %v161
    %v170 = vld [vmem:[#allocation8] sm:$0xff]
    %v171 = vld [vmem:[#allocation8 + $0x8] sm:$0xff]
    %v172 = vld [vmem:[#allocation8 + $0x10] sm:$0xff]
    %v173 = vld [vmem:[#allocation8 + $0x18] sm:$0xff]
    %v174 = vld [vmem:[%s3] sm:$0x1]
    %v176 = vperm.slane %v174, 0
    %vm186 = vcmask 1041409
    %v187 = vsel %vm186, %v163, %v162
    %vm188 = vcmask 1042434
    %v189 = vsel %vm188, %v164, %v187
    %vm190 = vcmask 1043459
    %v191 = vsel %vm190, %v165, %v189
    %vm192 = vcmask 1044484
    %v193 = vsel %vm192, %v166, %v191
    %vm194 = vcmask 1045509
    %v195 = vsel %vm194, %v167, %v193
    %vm196 = vcmask 1046534
    %v197 = vsel %vm196, %v168, %v195
    %vm198 = vcmask 1047559
    %v199 = vsel %vm198, %v169, %v197
    %v200 = vsel %vm97, %v199, 0
    %202 = vmatpush.msra.mxu0 0.0
    %203 = vmatpush.msra.mxu0 0.0
    %204 = vmatpush.msra.mxu0 0.0
    %205 = vmatpush.msra.mxu0 0.0
    %206 = vmatpush.msra.mxu0 0.0
    %207 = vmatpush.msra.mxu0 0.0
    %208 = vmatpush.msra.mxu0 0.0
    %209 = vmatpush.msra.mxu0 0.0
    %210 = vmatpush.msra.mxu0 0.0
    %211 = vmatpush.msra.mxu0 0.0
    %212 = vmatpush.msra.mxu0 0.0
    %213 = vmatpush.msra.mxu0 0.0
    %214 = vmatpush.msra.mxu0 %v173
    %215 = vmatpush.msra.mxu0 %v172
    %216 = vmatpush.msra.mxu0 %v171
    %217 = vmatpush.msra.mxu0 %v170
    %218 = vmatmul.f32.gmra.mxu0 %v200
    %v219 = vpop.f32.mrf.mxu0
    %v220 = vadd.f32 %v176, %v219
    %221 = vdwg.mxu0
    %v222 = vmax.f32 %v220, 0.0
    %v223 = vld [vmem:[%s4] sm:$0x1]
    %v225 = vperm.slane %v223, 0
    %v227 = vmul.f32 %v222, %v225
    %v228 = vsel %vm97, %v227, 0.0
    %229 = vadd.xlane.f32.xlu0 %v228
    %v230 = vpop.xlane.xlu0 %229
    %v231 = vld [vmem:[#allocation2] sm:$0x1]
    %v233 = vperm.slane %v231, 0
    %v235 = vadd.f32 %v230, %v233
    %v236 = vxor.u32 %v235, 2147483648
    %v237 = vmul.f32 %v236, 1.442695
    %v238 = vpow.pop %v237
    %v239 = vadd.f32 %v238, 1.0
    %v240 = vrcp.pop %v239
    %v241 = vmul.f32 %v239, %v240
    %v242 = vsub.f32 1.0, %v241
    %v243 = vmul.f32 %v240, %v242
    %v244 = vadd.f32 %v240, %v243
    %vm245 = vweird.f32 %v239
    %vm246 = vweird.f32 %v240
    %vm247 = vmor %vm245, %vm246
    %v248 = vsel %vm247, %v240, %v244
    %v249 = vand.u32 2147483647, %v239
    %vm250 = vcmp.eq.f32.partialorder %v249, 8.507059e+37
    %v251 = vand.u32 %v239, 2147483648
    %v252 = vor.u32 1.1754944e-38, %v251
    %v253 = vsel %vm250, %v252, %v248
    %v254 = vmul.f32 1.0, %v253
    %256 = vset.pattern.permute.xlu0 0
    %257 = vperm.xlu0 %256, %v254
    %v258 = vpop.permute.xlu0 %257
    %260 = vst [vmem:[#allocation9] sm:$0xff] %v258
    // Predicated region
    $region38: #{tpu_custom_call.1} parent=1 // pred_check
      _
    $region39: #{tpu_custom_call.1} parent=1 // pred_check_branch
      %262 = sbr.rel (0) target = $region41
    $region40: #{tpu_custom_call.1} parent=1 // pred_region
      %264 = vsyncadd [#allocation5], 0
      %s266 = sshll.u32 [#allocation9], 4
      %s267 = int_to_ptr.vmem [resolvable:$true] %s266
      %s268 = sshll.u32 %s6, 4
      %s269 = int_to_ptr.hbm [resolvable:$true] %s268
      %271 = dma.vmem_to_hbm [thread:$0]  %s267, 128, %s269, [#allocation5]
    $region41: #{tpu_custom_call.1} parent=1 // pred_fallthru
      _
    // Predicated region
    $region42: #{tpu_custom_call.1} parent=1 // pred_check
      _
    $region43: #{tpu_custom_call.1} parent=1 // pred_check_branch
      %273 = sbr.rel (0) target = $region45
    $region44: #{tpu_custom_call.1} parent=1 // pred_region
      %275 = dma.done [#allocation5], 128
    $region45: #{tpu_custom_call.1} parent=1 // pred_fallthru
      _
    %276 = vsyncpa [#allocation4], 1
    %277 = vsyncpa [#allocation7], 1
    %278 = vsyncpa [#allocation5], 1

</llo_original>
